<compile_context>
chip_gen: v6e
topology: v6e:2x2x1
jax: 0.10.0
libtpu: 0.0.40
codegen_flags: <defaults>
</compile_context>

<pallas_src>
import math

import jax
import jax.numpy as jnp
from jax import lax
from jax.experimental import pallas as pl
from jax.experimental.pallas import tpu as pltpu


def _round_up(x, m):
    return ((x + m - 1) // m) * m


# ---------------------------------------------------------------------------
# Fused kernel: self-attention (cached in VMEM scratch) + candidate scoring
# ---------------------------------------------------------------------------
def _fused_kernel(x_ref, delta_ref, wqkv_ref, bqkv_ref, cand_ref,
                  interval_ref, wval_ref, pre_ref, sao_ref):
    # ----- attention: computed once per batch element (p == 0), cached -----
    @pl.when(pl.program_id(1) == 0)
    def _():
        x = x_ref[0]                                            # (L, Fp) f32
        fp = x.shape[-1]
        qkv = jnp.dot(x, wqkv_ref[...],
                      preferred_element_type=jnp.float32) + bqkv_ref[...]
        q = qkv[:, :fp]
        k = qkv[:, fp:2 * fp]
        v = qkv[:, 2 * fp:]
        # q k^T without an explicit transpose (contract last dims).
        logits = lax.dot_general(
            q, k, dimension_numbers=(((1,), (1,)), ((), ())),
            preferred_element_type=jnp.float32) + delta_ref[0]
        m = jnp.max(logits, axis=-1, keepdims=True)
        e = jnp.exp(logits - m)
        attn = e / jnp.sum(e, axis=-1, keepdims=True)
        out = jnp.dot(attn, v, preferred_element_type=jnp.float32)  # (L, Fp)
        sao_ref[...] = out.astype(sao_ref.dtype)

    # ----- candidate scoring for this poi tile -----
    sao = sao_ref[...]                                          # (L, Fp) bf16
    cand = cand_ref[...]                                        # (tp, Fp) bf16
    scores = lax.dot_general(
        sao, cand, dimension_numbers=(((1,), (1,)), ((), ())),
        preferred_element_type=jnp.float32)                     # (L, tp) f32
    weighted = scores * interval_ref[0].astype(jnp.float32)     # (L, tp) f32
    # value head as a (1,L) x (L,tp) matmul -> reduction on the MXU.
    pre = jnp.dot(wval_ref[...], weighted,
                  preferred_element_type=jnp.float32)           # (1, tp)
    pre_ref[...] = pre.reshape(1, 1, -1).astype(pre_ref.dtype)


def _stan_fused(inputs_p, delta, wqkv, bqkv, cand_p, interval_p, wval, *, tp):
    B, L, Fp = inputs_p.shape
    Pp = cand_p.shape[0]
    n_p = Pp // tp
    return pl.pallas_call(
        _fused_kernel,
        out_shape=jax.ShapeDtypeStruct((B, 1, Pp), jnp.float32),
        grid_spec=pltpu.PrefetchScalarGridSpec(
            num_scalar_prefetch=0,
            grid=(B, n_p),
            in_specs=[
                pl.BlockSpec((1, L, Fp), lambda b, p: (b, 0, 0)),   # inputs
                pl.BlockSpec((1, L, L), lambda b, p: (b, 0, 0)),    # delta bias
                pl.BlockSpec((Fp, 3 * Fp), lambda b, p: (0, 0)),    # [Wq|Wk|Wv]^T
                pl.BlockSpec((1, 3 * Fp), lambda b, p: (0, 0)),     # [bq|bk|bv]
                pl.BlockSpec((tp, Fp), lambda b, p: (p, 0)),        # cand tile
                pl.BlockSpec((1, L, tp), lambda b, p: (b, 0, p)),   # interval tile
                pl.BlockSpec((1, L), lambda b, p: (0, 0)),          # value weight
            ],
            out_specs=pl.BlockSpec((1, 1, tp), lambda b, p: (b, 0, p)),
            scratch_shapes=[pltpu.VMEM((L, Fp), jnp.bfloat16)],     # cached attn out
        ),
        compiler_params=pltpu.CompilerParams(
            dimension_semantics=("parallel", "arbitrary")),
    )(inputs_p, delta, wqkv, bqkv, cand_p, interval_p, wval)


# ---------------------------------------------------------------------------
# Plain-JAX preprocessing (gathers, pairwise deltas, global normalisation)
# ---------------------------------------------------------------------------
def _haversine(lat1, lon1, lat2, lon2):
    p = jnp.pi / 180.0
    a = (0.5 - jnp.cos((lat2 - lat1) * p) / 2.0
         + jnp.cos(lat1 * p) * jnp.cos(lat2 * p)
         * (1.0 - jnp.cos((lon2 - lon1) * p)) / 2.0)
    a = jnp.clip(a, 0.0, 1.0)
    return 12742.0 * jnp.arcsin(jnp.sqrt(a))


def _preprocess(params, user, poi, tod, dow, lat, lon, unixtime, distance_matrix):
    inputs = (params["user_emb"][user] + params["poi_emb"][poi]
              + params["tod_emb"][tod] + params["dow_emb"][dow])    # (B, L, F)

    delta_s = _haversine(lat[:, :, None], lon[:, :, None],
                         lat[:, None, :], lon[:, None, :])           # (B, L, L)
    delta_t = jnp.abs(unixtime[:, :, None] - unixtime[:, None, :])   # (B, L, L)

    # NOTE: mirrors the torch code; (su - sl) etc. can be 0 for degenerate
    # inputs (constant coords / times) and would produce NaN/Inf there too.
    su, sl = delta_s.max(), delta_s.min()
    tu, tl = delta_t.max(), delta_t.min()
    delta = (jnp.exp(-delta_s / (su - sl)) + jnp.exp(-delta_t / (tu - tl))) / 2.0

    B, L = user.shape
    P = distance_matrix.shape[0]
    gaps = jnp.abs(unixtime[:, 1:] - unixtime[:, :-1])
    time_interval = jnp.concatenate(
        [jnp.zeros((B, 1), unixtime.dtype), gaps], axis=1)           # (B, L)
    interval_t = jnp.broadcast_to(time_interval[:, :, None], (B, L, P))
    interval_s = jnp.take(distance_matrix, poi, axis=0)              # (B, L, P)

    su1, sl1 = interval_s.max(), interval_s.min()
    tu1, tl1 = interval_t.max(), interval_t.min()
    interval = (jnp.exp(-interval_s / (su1 - sl1))
                + jnp.exp(-interval_t / (tu1 - tl1))) / 2.0           # (B, L, P)

    cand_emb = params["poi_emb"]                                      # (P, F)
    return inputs, delta, interval, cand_emb


# ---------------------------------------------------------------------------
# Full forward (Pallas) and pure-JAX reference
# ---------------------------------------------------------------------------
@jax.jit
def stan_forward(params, user, poi, cat, lat, lon, tod, dow, unixtime,
                 distance_matrix):
    del cat  # unused by the torch forward's output (cat_emb is dead code)
    inputs, delta, interval, cand_emb = _preprocess(
        params, user, poi, tod, dow, lat, lon, unixtime, distance_matrix)

    B, L, F = inputs.shape
    P = cand_emb.shape[0]

    Fp = _round_up(F, 128)
    Pp0 = _round_up(P, 128)
    tp = min(Pp0, 2048)                 # big lane-dense poi tiles, tiny VMEM cost
    Pp = _round_up(Pp0, tp)
    pad_f = Fp - F
    pad_p = Pp - P

    # Zero-padding the feature axis is exact: padded columns stay zero through
    # q/k/v, the attention output and the candidate dot products; padded poi
    # rows/columns are zero and sliced off at the end.
    inputs_p = jnp.pad(inputs, ((0, 0), (0, 0), (0, pad_f)))
    wq_t = jnp.pad(params["sq_w"].T, ((0, pad_f), (0, pad_f)))
    wk_t = jnp.pad(params["sk_w"].T, ((0, pad_f), (0, pad_f)))
    wv_t = jnp.pad(params["sv_w"].T, ((0, pad_f), (0, pad_f)))
    wqkv = jnp.concatenate([wq_t, wk_t, wv_t], axis=1)                # (Fp, 3Fp)
    bqkv = jnp.concatenate([jnp.pad(params["sq_b"], (0, pad_f)),
                            jnp.pad(params["sk_b"], (0, pad_f)),
                            jnp.pad(params["sv_b"], (0, pad_f))]
                           ).reshape(1, 3 * Fp)

    # The two P-scaled streams go to bf16 (MXU operands / DMA bytes); the
    # softmax path and all elementwise math stay f32.
    cand_p = jnp.pad(cand_emb, ((0, pad_p), (0, pad_f))).astype(jnp.bfloat16)
    interval_p = jnp.pad(interval, ((0, 0), (0, 0), (0, pad_p))
                         ).astype(jnp.bfloat16)                       # (B, L, Pp)
    wval = params["value_w"].reshape(1, L)

    pre_p = _stan_fused(inputs_p, delta, wqkv, bqkv, cand_p, interval_p,
                        wval, tp=tp)                                   # (B, 1, Pp)
    pre = pre_p[:, 0, :P] + params["value_b"][0]
    return pre, pre


@jax.jit
def stan_reference(params, user, poi, cat, lat, lon, tod, dow, unixtime,
                   distance_matrix):
    del cat
    inputs, delta, interval, cand_emb = _preprocess(
        params, user, poi, tod, dow, lat, lon, unixtime, distance_matrix)
    q = inputs @ params["sq_w"].T + params["sq_b"]
    k = inputs @ params["sk_w"].T + params["sk_b"]
    v = inputs @ params["sv_w"].T + params["sv_b"]
    logits = jnp.einsum("bld,bmd->blm", q, k) + delta
    attn = jax.nn.softmax(logits, axis=-1)
    sao = jnp.einsum("blm,bmd->bld", attn, v)
    scores = jnp.einsum("pd,bld->bpl", cand_emb, sao)
    scores = scores * jnp.transpose(interval, (0, 2, 1))
    pre = jnp.einsum("bpl,l->bp", scores, params["value_w"][0]) + params["value_b"][0]
    return pre, pre


def _linear_init(kw, kb, out_f, in_f):
    bound = 1.0 / math.sqrt(in_f)
    w = jax.random.uniform(kw, (out_f, in_f), jnp.float32, -bound, bound)
    b = jax.random.uniform(kb, (out_f,), jnp.float32, -bound, bound)
    return w, b


if __name__ == "__main__":
    # L = 25 is fixed by the module (self.value = nn.Linear(25, 1)).
    B, L, F = 2, 25, 32
    userNum, poiNum, catNum = 10, 40, 5

    key = jax.random.PRNGKey(0)
    ks = jax.random.split(key, 24)

    sq_w, sq_b = _linear_init(ks[4], ks[5], F, F)
    sk_w, sk_b = _linear_init(ks[6], ks[7], F, F)
    sv_w, sv_b = _linear_init(ks[8], ks[9], F, F)
    value_w, value_b = _linear_init(ks[10], ks[11], 1, L)

    params = {
        "user_emb": jax.random.normal(ks[0], (userNum, F), jnp.float32),
        "poi_emb": jax.random.normal(ks[1], (poiNum, F), jnp.float32),
        "tod_emb": jax.random.normal(ks[2], (24, F), jnp.float32),
        "dow_emb": jax.random.normal(ks[3], (7, F), jnp.float32),
        "sq_w": sq_w, "sq_b": sq_b,
        "sk_w": sk_w, "sk_b": sk_b,
        "sv_w": sv_w, "sv_b": sv_b,
        "value_w": value_w, "value_b": value_b,
    }

    user = jax.random.randint(ks[12], (B, L), 0, userNum)
    poi = jax.random.randint(ks[13], (B, L), 0, poiNum)
    cat = jax.random.randint(ks[14], (B, L), 0, catNum)
    tod = jax.random.randint(ks[15], (B, L), 0, 24)
    dow = jax.random.randint(ks[16], (B, L), 0, 7)
    lat = jax.random.uniform(ks[17], (B, L), jnp.float32, -60.0, 60.0)
    lon = jax.random.uniform(ks[18], (B, L), jnp.float32, -170.0, 170.0)
    unixtime = jax.random.uniform(ks[19], (B, L), jnp.float32, 0.0, 1.0e5)
    distance_matrix = jax.random.uniform(
        ks[20], (poiNum, poiNum), jnp.float32, 0.0, 50.0)

    pre, pre2 = stan_forward(params, user, poi, cat, lat, lon, tod, dow,
                             unixtime, distance_matrix)
    pre = jax.block_until_ready(pre)

    ref, _ = stan_reference(params, user, poi, cat, lat, lon, tod, dow,
                            unixtime, distance_matrix)

    assert pre.shape == (B, poiNum), pre.shape
    assert bool(jnp.all(jnp.isfinite(pre)))
    max_err = float(jnp.max(jnp.abs(pre - ref)))
    assert jnp.allclose(pre, ref, rtol=5e-2, atol=5e-2), f"max abs diff {max_err}"

    print("KERNEL_OK")
</pallas_src>

<mosaic_0001>
module attributes {stable_mosaic.version = 11 : i64} {
  func.func @_fused_kernel(%arg0: i32, %arg1: i32, %arg2: memref<1x25x128xf32, #tpu.memory_space<vmem>>, %arg3: memref<1x25x25xf32, #tpu.memory_space<vmem>>, %arg4: memref<128x384xf32, #tpu.memory_space<vmem>>, %arg5: memref<1x384xf32, #tpu.memory_space<vmem>>, %arg6: memref<128x128xbf16, #tpu.memory_space<vmem>>, %arg7: memref<1x25x128xbf16, #tpu.memory_space<vmem>>, %arg8: memref<1x25xf32, #tpu.memory_space<vmem>>, %arg9: memref<1x1x128xf32, #tpu.memory_space<vmem>>, %arg10: memref<25x128xbf16, #tpu.memory_space<vmem>>) attributes {dimension_semantics = [#tpu.dimension_semantics<parallel>, #tpu.dimension_semantics<arbitrary>], iteration_bounds = array<i64: 2, 1>, scalar_prefetch = 0 : i64, scratch_operands = 1 : i64, tpu.core_type = #tpu.core_type<tc>, window_params = [{transform_indices = @transform_0, window_bounds = array<i64: 1, 25, 128>}, {transform_indices = @transform_1, window_bounds = array<i64: 1, 25, 25>}, {pipeline_mode = #tpu.pipeline_mode<synchronous>, transform_indices = @transform_2, window_bounds = array<i64: 128, 384>}, {pipeline_mode = #tpu.pipeline_mode<synchronous>, transform_indices = @transform_3, window_bounds = array<i64: 1, 384>}, {transform_indices = @transform_4, window_bounds = array<i64: 128, 128>}, {transform_indices = @transform_5, window_bounds = array<i64: 1, 25, 128>}, {pipeline_mode = #tpu.pipeline_mode<synchronous>, transform_indices = @transform_6, window_bounds = array<i64: 1, 25>}, {transform_indices = @transform_7, window_bounds = array<i64: 1, 1, 128>}]} {
    %c0_i32 = arith.constant 0 : i32
    %0 = arith.cmpi eq, %arg1, %c0_i32 : i32
    %1 = arith.extui %0 : i1 to i32
    %c0_i32_0 = arith.constant 0 : i32
    %2 = arith.cmpi ne, %1, %c0_i32_0 : i32
    scf.if %2 {
      %c0_13 = arith.constant 0 : index
      %c0_14 = arith.constant 0 : index
      %c0_15 = arith.constant 0 : index
      %14 = vector.load %arg2[%c0_13, %c0_14, %c0_15] : memref<1x25x128xf32, #tpu.memory_space<vmem>>, vector<1x25x128xf32>
      %15 = vector.shape_cast %14 : vector<1x25x128xf32> to vector<25x128xf32>
      %c0_16 = arith.constant 0 : index
      %c0_17 = arith.constant 0 : index
      %16 = vector.load %arg4[%c0_16, %c0_17] : memref<128x384xf32, #tpu.memory_space<vmem>>, vector<128x384xf32>
      %cst_18 = arith.constant dense<0.000000e+00> : vector<25x384xf32>
      %17 = tpu.matmul %15, %16, %cst_18 {dimension_numbers = #tpu.dot_dimension_numbers<[1], [0], [0], [1], [0, 0, 1, 1], [], []>} : vector<25x128xf32>, vector<128x384xf32>, vector<25x384xf32> -> vector<25x384xf32>
      %c0_19 = arith.constant 0 : index
      %c0_20 = arith.constant 0 : index
      %18 = vector.load %arg5[%c0_19, %c0_20] : memref<1x384xf32, #tpu.memory_space<vmem>>, vector<1x384xf32>
      %19 = vector.broadcast %18 : vector<1x384xf32> to vector<25x384xf32>
      %20 = arith.addf %17, %19 : vector<25x384xf32>
      %21 = vector.extract_strided_slice %20 {offsets = [0, 0], sizes = [25, 128], strides = [1, 1]} : vector<25x384xf32> to vector<25x128xf32>
      %22 = vector.extract_strided_slice %20 {offsets = [0, 128], sizes = [25, 128], strides = [1, 1]} : vector<25x384xf32> to vector<25x128xf32>
      %23 = vector.extract_strided_slice %20 {offsets = [0, 256], sizes = [25, 128], strides = [1, 1]} : vector<25x384xf32> to vector<25x128xf32>
      %cst_21 = arith.constant dense<0.000000e+00> : vector<25x25xf32>
      %24 = tpu.matmul %21, %22, %cst_21 {dimension_numbers = #tpu.dot_dimension_numbers<[1], [1], [0], [0], [0, 0, 1, 0], [], []>} : vector<25x128xf32>, vector<25x128xf32>, vector<25x25xf32> -> vector<25x25xf32>
      %c0_22 = arith.constant 0 : index
      %c0_23 = arith.constant 0 : index
      %c0_24 = arith.constant 0 : index
      %25 = vector.load %arg3[%c0_22, %c0_23, %c0_24] : memref<1x25x25xf32, #tpu.memory_space<vmem>>, vector<1x25x25xf32>
      %26 = vector.shape_cast %25 : vector<1x25x25xf32> to vector<25x25xf32>
      %27 = arith.addf %24, %26 : vector<25x25xf32>
      %cst_25 = arith.constant dense<0xFF800000> : vector<25xf32>
      %28 = vector.multi_reduction <maximumf>, %27, %cst_25 [1] : vector<25x25xf32> to vector<25xf32>
      %29 = vector.shape_cast %28 : vector<25xf32> to vector<25x1xf32>
      %30 = vector.broadcast %29 : vector<25x1xf32> to vector<25x25xf32>
      %31 = arith.subf %27, %30 : vector<25x25xf32>
      %32 = math.exp %31 : vector<25x25xf32>
      %cst_26 = arith.constant dense<0.000000e+00> : vector<25xf32>
      %33 = vector.multi_reduction <add>, %32, %cst_26 [1] : vector<25x25xf32> to vector<25xf32>
      %34 = vector.shape_cast %33 : vector<25xf32> to vector<25x1xf32>
      %35 = vector.broadcast %34 : vector<25x1xf32> to vector<25x25xf32>
      %36 = arith.divf %32, %35 : vector<25x25xf32>
      %cst_27 = arith.constant dense<0.000000e+00> : vector<25x128xf32>
      %37 = tpu.matmul %36, %23, %cst_27 {dimension_numbers = #tpu.dot_dimension_numbers<[1], [0], [0], [1], [0, 0, 1, 1], [], []>} : vector<25x25xf32>, vector<25x128xf32>, vector<25x128xf32> -> vector<25x128xf32>
      %38 = arith.truncf %37 : vector<25x128xf32> to vector<25x128xbf16>
      %c0_28 = arith.constant 0 : index
      %c0_29 = arith.constant 0 : index
      %39 = vector.load %arg10[%c0_28, %c0_29] : memref<25x128xbf16, #tpu.memory_space<vmem>>, vector<25x128xbf16>
      tpu.vector_store %arg10[%c0_28, %c0_29], %38 {strides = array<i32>} : memref<25x128xbf16, #tpu.memory_space<vmem>>, vector<25x128xbf16>,
    } else {
    }
    %c0 = arith.constant 0 : index
    %c0_1 = arith.constant 0 : index
    %3 = vector.load %arg10[%c0, %c0_1] : memref<25x128xbf16, #tpu.memory_space<vmem>>, vector<25x128xbf16>
    %c0_2 = arith.constant 0 : index
    %c0_3 = arith.constant 0 : index
    %4 = vector.load %arg6[%c0_2, %c0_3] : memref<128x128xbf16, #tpu.memory_space<vmem>>, vector<128x128xbf16>
    %cst = arith.constant dense<0.000000e+00> : vector<25x128xf32>
    %5 = tpu.matmul %3, %4, %cst {dimension_numbers = #tpu.dot_dimension_numbers<[1], [1], [0], [0], [0, 0, 1, 0], [], []>} : vector<25x128xbf16>, vector<128x128xbf16>, vector<25x128xf32> -> vector<25x128xf32>
    %c0_4 = arith.constant 0 : index
    %c0_5 = arith.constant 0 : index
    %c0_6 = arith.constant 0 : index
    %6 = vector.load %arg7[%c0_4, %c0_5, %c0_6] : memref<1x25x128xbf16, #tpu.memory_space<vmem>>, vector<1x25x128xbf16>
    %7 = vector.shape_cast %6 : vector<1x25x128xbf16> to vector<25x128xbf16>
    %8 = arith.extf %7 : vector<25x128xbf16> to vector<25x128xf32>
    %9 = arith.mulf %5, %8 : vector<25x128xf32>
    %c0_7 = arith.constant 0 : index
    %c0_8 = arith.constant 0 : index
    %10 = vector.load %arg8[%c0_7, %c0_8] : memref<1x25xf32, #tpu.memory_space<vmem>>, vector<1x25xf32>
    %cst_9 = arith.constant dense<0.000000e+00> : vector<1x128xf32>
    %11 = tpu.matmul %10, %9, %cst_9 {dimension_numbers = #tpu.dot_dimension_numbers<[1], [0], [0], [1], [0, 0, 1, 1], [], []>} : vector<1x25xf32>, vector<25x128xf32>, vector<1x128xf32> -> vector<1x128xf32>
    %12 = vector.shape_cast %11 : vector<1x128xf32> to vector<1x1x128xf32>
    %c0_10 = arith.constant 0 : index
    %c0_11 = arith.constant 0 : index
    %c0_12 = arith.constant 0 : index
    %13 = vector.load %arg9[%c0_10, %c0_11, %c0_12] : memref<1x1x128xf32, #tpu.memory_space<vmem>>, vector<1x1x128xf32>
    tpu.vector_store %arg9[%c0_10, %c0_11, %c0_12], %12 {strides = array<i32>} : memref<1x1x128xf32, #tpu.memory_space<vmem>>, vector<1x1x128xf32>,
    return
  }
  func.func @transform_0(%arg0: i32, %arg1: i32) -> (i32, i32, i32) {
    %c0_i32 = arith.constant 0 : i32
    %c0_i32_0 = arith.constant 0 : i32
    %c0_i32_1 = arith.constant 0 : i32
    return %arg0, %c0_i32, %c0_i32_0 : i32, i32, i32
  }
  func.func @transform_1(%arg0: i32, %arg1: i32) -> (i32, i32, i32) {
    %c0_i32 = arith.constant 0 : i32
    %c0_i32_0 = arith.constant 0 : i32
    %c0_i32_1 = arith.constant 0 : i32
    return %arg0, %c0_i32, %c0_i32_0 : i32, i32, i32
  }
  func.func @transform_2(%arg0: i32, %arg1: i32) -> (i32, i32) {
    %c0_i32 = arith.constant 0 : i32
    %c0_i32_0 = arith.constant 0 : i32
    %c0_i32_1 = arith.constant 0 : i32
    return %c0_i32, %c0_i32_0 : i32, i32
  }
  func.func @transform_3(%arg0: i32, %arg1: i32) -> (i32, i32) {
    %c0_i32 = arith.constant 0 : i32
    %c0_i32_0 = arith.constant 0 : i32
    %c0_i32_1 = arith.constant 0 : i32
    return %c0_i32, %c0_i32_0 : i32, i32
  }
  func.func @transform_4(%arg0: i32, %arg1: i32) -> (i32, i32) {
    %c0_i32 = arith.constant 0 : i32
    %c0_i32_0 = arith.constant 0 : i32
    return %arg1, %c0_i32 : i32, i32
  }
  func.func @transform_5(%arg0: i32, %arg1: i32) -> (i32, i32, i32) {
    %c0_i32 = arith.constant 0 : i32
    %c0_i32_0 = arith.constant 0 : i32
    return %arg0, %c0_i32, %arg1 : i32, i32, i32
  }
  func.func @transform_6(%arg0: i32, %arg1: i32) -> (i32, i32) {
    %c0_i32 = arith.constant 0 : i32
    %c0_i32_0 = arith.constant 0 : i32
    %c0_i32_1 = arith.constant 0 : i32
    return %c0_i32, %c0_i32_0 : i32, i32
  }
  func.func @transform_7(%arg0: i32, %arg1: i32) -> (i32, i32, i32) {
    %c0_i32 = arith.constant 0 : i32
    %c0_i32_0 = arith.constant 0 : i32
    return %arg0, %c0_i32, %arg1 : i32, i32, i32
  }
}

</mosaic_0001>

<llo_original>
// kernel: stan_forward.1
$region0: #{stan_forward.1}
  #allocation0 [shape = 'u32[]', space=smem, size = 0x4, offset = 0x4, fixed_abs, tag = 'smem constant byte address 0x4 - core index']
  #allocation1 [shape = 'u32[144,128]{1,0:T(1,128)}', space=vmem, size = 0x12000, scoped, tag = 'internal scratch']
  #allocation2 [shape = 'bf16[25,128]{1,0:T(8,128)(2,1)}', space=vmem, size = 0x2000, scoped, tag = 'scratch operand']
  %s0 = inlined_call_operand.vmem [shape: f32[2,25,128], index: 0, kind: input, shape index: {}]
  %s1 = inlined_call_operand.vmem [shape: f32[2,25,25], index: 1, kind: input, shape index: {}]
  %s2 = inlined_call_operand.vmem [shape: f32[128,384], index: 2, kind: input, shape index: {}]
  %s3 = inlined_call_operand.vmem [shape: f32[1,384], index: 3, kind: input, shape index: {}]
  %s4 = inlined_call_operand.vmem [shape: bf16[128,128], index: 4, kind: input, shape index: {}]
  %s5 = inlined_call_operand.vmem [shape: bf16[2,25,128], index: 5, kind: input, shape index: {}]
  %s6 = inlined_call_operand.vmem [shape: f32[1,25], index: 6, kind: input, shape index: {}]
  %s7 = inlined_call_operand.vmem [shape: f32[2,1,128], index: 7, kind: output, shape index: {}]
  %s8 = sld [smem:[#allocation0]]
  $region65: #{stan_forward.1} parent=0
    _
  %s10 = ssub.s32 1, %s8
  %s11 = scalar_select 0, %s10, %s8
  loop: start=0, step=1, limit=4
  $region2: #{stan_forward.1} parent=0 // loop_pre_header
    _
  $region3: #{stan_forward.1} parent=0 // loop_header
    %s13 = sphi 0, %s17
    %p14 = scmp.ge.s32.totalorder %s13, 4
    %s20 = sphi 0, %s32
    %s21 = sphi 0, %s28
    %s22 = sphi 0, %s20
    %s23 = sphi 0, %s21
    %s24 = sphi 0, %s22
    %s25 = sphi 0, %s23
    %s35 = sphi 0, %s37
    %s38 = sphi 0, %s35
    %s39 = sphi 0, %s38
    %s55 = sphi 0, %s39
    %s61 = sphi 0, %s63
    %s64 = sphi 0, %s61
    %s65 = sphi 0, %s64
    %s81 = sphi 0, %s65
    %s85 = sphi 0, %s85
    %s87 = sphi 0, %s85
    %s88 = sphi 0, %s87
    %s102 = sphi 0, %s88
    %s106 = sphi 0, %s106
    %s108 = sphi 0, %s106
    %s109 = sphi 0, %s108
    %s123 = sphi 0, %s109
    %s129 = sphi 0, %s131
    %s132 = sphi 0, %s129
    %s133 = sphi 0, %s132
    %s149 = sphi 0, %s133
    %s157 = sphi 0, %s159
    %s160 = sphi 0, %s157
    %s161 = sphi 0, %s160
    %s177 = sphi 0, %s161
    %s181 = sphi 0, %s181
    %s183 = sphi 0, %s181
    %s184 = sphi 0, %s183
    %s198 = sphi 0, %s184
    %s206 = sphi 0, %s208
    %s209 = sphi 0, %s206
    %s210 = sphi 0, %s209
    %s226 = sphi 0, %s210
  $region4: #{stan_forward.1} parent=0 // loop_header_branch
    %16 = sbr.rel (%p14) target = $region8
  $region5: #{stan_forward.1} parent=0 // loop_body
    %s18 = ssub.s32 %s13, 1
    %s19 = ssub.s32 %s13, 2
    %s26 = sadd.s32 1, %s21
    %p27 = scmp.ge.s32.totalorder %s26, 1
    %s28 = scalar_select %p27, 0, %s26
    %s29 = sadd.s32 1, %s20
    %s30 = scalar_select %p27, %s29, %s20
    %p31 = scmp.ge.s32.totalorder %s30, 2
    %s32 = scalar_select %p31, 0, %s30
    %s33 = ssub.s32 %s20, %s32
    %p34 = scmp.eq.s32.totalorder %s33, 0
    %s36 = sadd.s32 %s35, 1
    %s37 = scalar_select %p34, %s35, %s36
    %p40 = pneg %p34
    %p41 = scmp.eq.s32.totalorder %s13, 1
    %p42 = por %p40, %p41
    %p43 = scmp.ne.s32.totalorder %s35, %s38
    %p44 = scmp.eq.s32.totalorder %s13, 0
    %p45 = por %p43, %p44
    %p46 = scmp.ne.s32.totalorder %s35, %s38
    %p47 = scmp.eq.s32.totalorder %s18, 1
    %p48 = por %p46, %p47
    %p49 = scmp.ne.s32.totalorder %s38, %s39
    %p50 = scmp.eq.s32.totalorder %s18, 0
    %p51 = por %p49, %p50
    %p52 = scmp.ne.s32.totalorder %s38, %s39
    %p53 = scmp.eq.s32.totalorder %s19, 1
    %p54 = por %p52, %p53
    %p56 = scmp.ne.s32.totalorder %s39, %s55
    %p57 = scmp.eq.s32.totalorder %s19, 0
    %p58 = por %p56, %p57
    %s59 = ssub.s32 %s20, %s32
    %p60 = scmp.eq.s32.totalorder %s59, 0
    %s62 = sadd.s32 %s61, 1
    %s63 = scalar_select %p60, %s61, %s62
    %p66 = pneg %p60
    %p67 = scmp.eq.s32.totalorder %s13, 1
    %p68 = por %p66, %p67
    %p69 = scmp.ne.s32.totalorder %s61, %s64
    %p70 = scmp.eq.s32.totalorder %s13, 0
    %p71 = por %p69, %p70
    %p72 = scmp.ne.s32.totalorder %s61, %s64
    %p73 = scmp.eq.s32.totalorder %s18, 1
    %p74 = por %p72, %p73
    %p75 = scmp.ne.s32.totalorder %s64, %s65
    %p76 = scmp.eq.s32.totalorder %s18, 0
    %p77 = por %p75, %p76
    %p78 = scmp.ne.s32.totalorder %s64, %s65
    %p79 = scmp.eq.s32.totalorder %s19, 1
    %p80 = por %p78, %p79
    %p82 = scmp.ne.s32.totalorder %s65, %s81
    %p83 = scmp.eq.s32.totalorder %s19, 0
    %p84 = por %p82, %p83
    %s86 = sadd.s32 %s85, 1
    %p89 = scmp.eq.s32.totalorder %s13, 1
    %p90 = scmp.ne.s32.totalorder %s85, %s87
    %p91 = scmp.eq.s32.totalorder %s13, 0
    %p92 = por %p90, %p91
    %p93 = scmp.ne.s32.totalorder %s85, %s87
    %p94 = scmp.eq.s32.totalorder %s18, 1
    %p95 = por %p93, %p94
    %p96 = scmp.ne.s32.totalorder %s87, %s88
    %p97 = scmp.eq.s32.totalorder %s18, 0
    %p98 = por %p96, %p97
    %p99 = scmp.ne.s32.totalorder %s87, %s88
    %p100 = scmp.eq.s32.totalorder %s19, 1
    %p101 = por %p99, %p100
    %p103 = scmp.ne.s32.totalorder %s88, %s102
    %p104 = scmp.eq.s32.totalorder %s19, 0
    %p105 = por %p103, %p104
    %s107 = sadd.s32 %s106, 1
    %p110 = scmp.eq.s32.totalorder %s13, 1
    %p111 = scmp.ne.s32.totalorder %s106, %s108
    %p112 = scmp.eq.s32.totalorder %s13, 0
    %p113 = por %p111, %p112
    %p114 = scmp.ne.s32.totalorder %s106, %s108
    %p115 = scmp.eq.s32.totalorder %s18, 1
    %p116 = por %p114, %p115
    %p117 = scmp.ne.s32.totalorder %s108, %s109
    %p118 = scmp.eq.s32.totalorder %s18, 0
    %p119 = por %p117, %p118
    %p120 = scmp.ne.s32.totalorder %s108, %s109
    %p121 = scmp.eq.s32.totalorder %s19, 1
    %p122 = por %p120, %p121
    %p124 = scmp.ne.s32.totalorder %s109, %s123
    %p125 = scmp.eq.s32.totalorder %s19, 0
    %p126 = por %p124, %p125
    %s127 = ssub.s32 %s21, %s28
    %p128 = scmp.eq.s32.totalorder %s127, 0
    %s130 = sadd.s32 %s129, 1
    %s131 = scalar_select %p128, %s129, %s130
    %p134 = pneg %p128
    %p135 = scmp.eq.s32.totalorder %s13, 1
    %p136 = por %p134, %p135
    %p137 = scmp.ne.s32.totalorder %s129, %s132
    %p138 = scmp.eq.s32.totalorder %s13, 0
    %p139 = por %p137, %p138
    %p140 = scmp.ne.s32.totalorder %s129, %s132
    %p141 = scmp.eq.s32.totalorder %s18, 1
    %p142 = por %p140, %p141
    %p143 = scmp.ne.s32.totalorder %s132, %s133
    %p144 = scmp.eq.s32.totalorder %s18, 0
    %p145 = por %p143, %p144
    %p146 = scmp.ne.s32.totalorder %s132, %s133
    %p147 = scmp.eq.s32.totalorder %s19, 1
    %p148 = por %p146, %p147
    %p150 = scmp.ne.s32.totalorder %s133, %s149
    %p151 = scmp.eq.s32.totalorder %s19, 0
    %p152 = por %p150, %p151
    %s153 = ssub.s32 %s20, %s32
    %s154 = ssub.s32 %s21, %s28
    %s155 = sor.u32 %s153, %s154
    %p156 = scmp.eq.s32.totalorder %s155, 0
    %s158 = sadd.s32 %s157, 1
    %s159 = scalar_select %p156, %s157, %s158
    %p162 = pneg %p156
    %p163 = scmp.eq.s32.totalorder %s13, 1
    %p164 = por %p162, %p163
    %p165 = scmp.ne.s32.totalorder %s157, %s160
    %p166 = scmp.eq.s32.totalorder %s13, 0
    %p167 = por %p165, %p166
    %p168 = scmp.ne.s32.totalorder %s157, %s160
    %p169 = scmp.eq.s32.totalorder %s18, 1
    %p170 = por %p168, %p169
    %p171 = scmp.ne.s32.totalorder %s160, %s161
    %p172 = scmp.eq.s32.totalorder %s18, 0
    %p173 = por %p171, %p172
    %p174 = scmp.ne.s32.totalorder %s160, %s161
    %p175 = scmp.eq.s32.totalorder %s19, 1
    %p176 = por %p174, %p175
    %p178 = scmp.ne.s32.totalorder %s161, %s177
    %p179 = scmp.eq.s32.totalorder %s19, 0
    %p180 = por %p178, %p179
    %s182 = sadd.s32 %s181, 1
    %p185 = scmp.eq.s32.totalorder %s13, 1
    %p186 = scmp.ne.s32.totalorder %s181, %s183
    %p187 = scmp.eq.s32.totalorder %s13, 0
    %p188 = por %p186, %p187
    %p189 = scmp.ne.s32.totalorder %s181, %s183
    %p190 = scmp.eq.s32.totalorder %s18, 1
    %p191 = por %p189, %p190
    %p192 = scmp.ne.s32.totalorder %s183, %s184
    %p193 = scmp.eq.s32.totalorder %s18, 0
    %p194 = por %p192, %p193
    %p195 = scmp.ne.s32.totalorder %s183, %s184
    %p196 = scmp.eq.s32.totalorder %s19, 1
    %p197 = por %p195, %p196
    %p199 = scmp.ne.s32.totalorder %s184, %s198
    %p200 = scmp.eq.s32.totalorder %s19, 0
    %p201 = por %p199, %p200
    %s202 = ssub.s32 %s20, %s32
    %s203 = ssub.s32 %s21, %s28
    %s204 = sor.u32 %s202, %s203
    %p205 = scmp.eq.s32.totalorder %s204, 0
    %s207 = sadd.s32 %s206, 1
    %s208 = scalar_select %p205, %s206, %s207
    %p211 = pneg %p205
    %p212 = scmp.eq.s32.totalorder %s13, 1
    %p213 = por %p211, %p212
    %p214 = scmp.ne.s32.totalorder %s206, %s209
    %p215 = scmp.eq.s32.totalorder %s13, 0
    %p216 = por %p214, %p215
    %p217 = scmp.ne.s32.totalorder %s206, %s209
    %p218 = scmp.eq.s32.totalorder %s18, 1
    %p219 = por %p217, %p218
    %p220 = scmp.ne.s32.totalorder %s209, %s210
    %p221 = scmp.eq.s32.totalorder %s18, 0
    %p222 = por %p220, %p221
    %p223 = scmp.ne.s32.totalorder %s209, %s210
    %p224 = scmp.eq.s32.totalorder %s19, 1
    %p225 = por %p223, %p224
    %p227 = scmp.ne.s32.totalorder %s210, %s226
    %p228 = scmp.eq.s32.totalorder %s19, 0
    %p229 = por %p227, %p228
    %p230 = scmp.le.s32.totalorder 1, %s13
    %p231 = scmp.lt.s32.totalorder %s13, 3
    %p232 = pnand %p230, %p231
    %p233 = pneg %p232
    // Predicated region
    $region9: #{stan_forward.1} parent=5 // pred_check
      _
    $region10: #{stan_forward.1} parent=5 // pred_check_branch
      %235 = sbr.rel (%p232) target = $region12
    $region11: #{stan_forward.1} parent=5 // pred_region
      %s236 = ssub.s32 %s13, 1
      // Predicated region
      $region13: #{stan_forward.1} parent=11 // pred_check
        %p237 = pneg %p98
      $region14: #{stan_forward.1} parent=11 // pred_check_branch
        %239 = sbr.rel (%p237) target = $region16
      $region15: #{stan_forward.1} parent=11 // pred_region
        _
      $region16: #{stan_forward.1} parent=11 // pred_fallthru
        _
      // Predicated region
      $region17: #{stan_forward.1} parent=11 // pred_check
        %p240 = pneg %p119
      $region18: #{stan_forward.1} parent=11 // pred_check_branch
        %242 = sbr.rel (%p240) target = $region20
      $region19: #{stan_forward.1} parent=11 // pred_region
        _
      $region20: #{stan_forward.1} parent=11 // pred_fallthru
        _
      // Predicated region
      $region21: #{stan_forward.1} parent=11 // pred_check
        %p243 = pneg %p145
      $region22: #{stan_forward.1} parent=11 // pred_check_branch
        %245 = sbr.rel (%p243) target = $region24
      $region23: #{stan_forward.1} parent=11 // pred_region
        %s246 = smul.u32 16, %s23
        %p247 = scmp.lt.s32.totalorder %s246, 15
        %s248 = scalar_select %p247, %s246, 15
        %s249 = smul.addr %s248, 4
        %s250 = scalar_lea.vmem %s4, %s249
        %s251 = smul.u32 16, %s23
      $region24: #{stan_forward.1} parent=11 // pred_fallthru
        _
      // Predicated region
      $region25: #{stan_forward.1} parent=11 // pred_check
        %p252 = pneg %p194
      $region26: #{stan_forward.1} parent=11 // pred_check_branch
        %254 = sbr.rel (%p252) target = $region28
      $region27: #{stan_forward.1} parent=11 // pred_region
        _
      $region28: #{stan_forward.1} parent=11 // pred_fallthru
        _
    $region12: #{stan_forward.1} parent=5 // pred_fallthru
      _
    %p255 = scmp.lt.s32.totalorder %s13, 2
    // Predicated region
    $region29: #{stan_forward.1} parent=5 // pred_check
      %p256 = pneg %p255
    $region30: #{stan_forward.1} parent=5 // pred_check_branch
      %258 = sbr.rel (%p256) target = $region32
    $region31: #{stan_forward.1} parent=5 // pred_region
      // Predicated region
      $region33: #{stan_forward.1} parent=31 // pred_check
        %p259 = pneg %p45
      $region34: #{stan_forward.1} parent=31 // pred_check_branch
        %261 = sbr.rel (%p259) target = $region36
      $region35: #{stan_forward.1} parent=31 // pred_region
        %p262 = scmp.lt.s32.totalorder %s20, 1
        %s263 = scalar_select %p262, %s20, 1
        %s264 = smul.addr %s263, 4
        %s265 = smul.addr %s264, 8
        %s266 = scalar_lea.vmem %s0, %s265
      $region36: #{stan_forward.1} parent=31 // pred_fallthru
        _
      // Predicated region
      $region37: #{stan_forward.1} parent=31 // pred_check
        %p267 = pneg %p71
      $region38: #{stan_forward.1} parent=31 // pred_check_branch
        %269 = sbr.rel (%p267) target = $region40
      $region39: #{stan_forward.1} parent=31 // pred_region
        %p270 = scmp.lt.s32.totalorder %s20, 1
        %s271 = scalar_select %p270, %s20, 1
        %s272 = smul.addr %s271, 4
        %s273 = smul.addr %s272, 8
        %s274 = scalar_lea.vmem %s1, %s273
      $region40: #{stan_forward.1} parent=31 // pred_fallthru
        _
      // Predicated region
      $region41: #{stan_forward.1} parent=31 // pred_check
        %p275 = pneg %p167
      $region42: #{stan_forward.1} parent=31 // pred_check_branch
        %277 = sbr.rel (%p275) target = $region44
      $region43: #{stan_forward.1} parent=31 // pred_region
        %p278 = scmp.lt.s32.totalorder %s20, 1
        %s279 = scalar_select %p278, %s20, 1
        %p280 = scmp.lt.s32.totalorder %s21, 0
        %s281 = scalar_select %p280, %s21, 0
        %s282 = smul.addr %s279, 4
        %s283 = sadd.s32 %s281, %s282
        %s284 = smul.addr %s283, 4
        %s285 = scalar_lea.vmem %s5, %s284
      $region44: #{stan_forward.1} parent=31 // pred_fallthru
        _
    $region32: #{stan_forward.1} parent=5 // pred_fallthru
      _
    %p286 = scmp.le.s32.totalorder 1, %s13
    %p287 = scmp.lt.s32.totalorder %s13, 3
    %p288 = pnand %p286, %p287
    %p289 = pneg %p288
    // Predicated region
    $region45: #{stan_forward.1} parent=5 // pred_check
      _
    $region46: #{stan_forward.1} parent=5 // pred_check_branch
      %291 = sbr.rel (%p288) target = $region48
    $region47: #{stan_forward.1} parent=5 // pred_region
      %s292 = ssub.s32 %s13, 1
      %p293 = scmp.lt.s32.totalorder %s22, 1
      %s294 = scalar_select %p293, %s22, 1
      %s295 = smul.addr %s294, 4
      %s296 = smul.addr %s295, 8
      %s297 = scalar_lea.vmem %s0, %s296
      %p298 = pneg %p51
      %p299 = pneg %p48
      %p300 = scmp.lt.s32.totalorder %s22, 1
      %s301 = scalar_select %p300, %s22, 1
      %s302 = smul.addr %s301, 4
      %s303 = smul.addr %s302, 8
      %s304 = scalar_lea.vmem %s1, %s303
      %p305 = pneg %p77
      %p306 = pneg %p74
      %p307 = pneg %p98
      %p308 = pneg %p95
      %p309 = pneg %p119
      %p310 = pneg %p116
      %s311 = smul.u32 16, %s23
      %p312 = scmp.lt.s32.totalorder %s311, 15
      %s313 = scalar_select %p312, %s311, 15
      %s314 = smul.addr %s313, 4
      %s315 = scalar_lea.vmem %s4, %s314
      %p316 = pneg %p145
      %p317 = pneg %p142
      %p318 = scmp.lt.s32.totalorder %s22, 1
      %s319 = scalar_select %p318, %s22, 1
      %p320 = scmp.lt.s32.totalorder %s23, 0
      %s321 = scalar_select %p320, %s23, 0
      %s322 = smul.addr %s319, 4
      %s323 = sadd.s32 %s321, %s322
      %s324 = smul.addr %s323, 4
      %s325 = scalar_lea.vmem %s5, %s324
      %p326 = pneg %p173
      %p327 = pneg %p170
      %p328 = pneg %p194
      %p329 = pneg %p191
      %p330 = pneg %p222
      %p331 = pneg %p219
      %p332 = scmp.lt.s32.totalorder %s22, 1
      %s333 = scalar_select %p332, %s22, 1
      %p334 = scmp.lt.s32.totalorder %s23, 0
      %s335 = scalar_select %p334, %s23, 0
      %s336 = sadd.s32 %s335, %s333
      %s337 = scalar_lea.vmem %s7, %s336
      %p338 = scmp.lt.s32.totalorder %s22, 1
      %s339 = scalar_select %p338, %s22, 1
      %s340 = smul.addr %s339, 4
      %s341 = smul.addr %s340, 8
      %s342 = scalar_lea.vmem %s0, %s341
      %p343 = scmp.lt.s32.totalorder %s22, 1
      %s344 = scalar_select %p343, %s22, 1
      %s345 = smul.addr %s344, 4
      %s346 = smul.addr %s345, 8
      %s347 = scalar_lea.vmem %s1, %s346
      %s348 = smul.u32 16, %s23
      %p349 = scmp.lt.s32.totalorder %s348, 15
      %s350 = scalar_select %p349, %s348, 15
      %s351 = smul.addr %s350, 4
      %s352 = scalar_lea.vmem %s4, %s351
      %s353 = smul.u32 16, %s23
      %p354 = scmp.lt.s32.totalorder %s22, 1
      %s355 = scalar_select %p354, %s22, 1
      %p356 = scmp.lt.s32.totalorder %s23, 0
      %s357 = scalar_select %p356, %s23, 0
      %s358 = smul.addr %s355, 4
      %s359 = sadd.s32 %s357, %s358
      %s360 = smul.addr %s359, 4
      %s361 = scalar_lea.vmem %s5, %s360
      %p362 = scmp.lt.s32.totalorder %s22, 1
      %s363 = scalar_select %p362, %s22, 1
      %p364 = scmp.lt.s32.totalorder %s23, 0
      %s365 = scalar_select %p364, %s23, 0
      %s366 = sadd.s32 %s365, %s363
      %s367 = scalar_lea.vmem %s7, %s366
      %p369 = scmp.eq.s32.totalorder %s23, 0
      // Predicated region
      $region49: #{stan_forward.1} parent=47 // pred_check
        %p370 = pneg %p369
      $region50: #{stan_forward.1} parent=47 // pred_check_branch
        %372 = sbr.rel (%p370) target = $region52
      $region51: #{stan_forward.1} parent=47 // pred_region
        %v373 = vld [vmem:[%s342] sm:$0xff]
        %v374 = vld [vmem:[%s342 + $0x8] sm:$0xff]
        %v375 = vld [vmem:[%s342 + $0x10] sm:$0xff]
        %v376 = vld [vmem:[%s342 + $0x18] sm:$0x1]
        %v377 = vld [vmem:[%s2] sm:$0xff]
        %v378 = vld [vmem:[%s2 + $0x8] sm:$0xff]
        %v379 = vld [vmem:[%s2 + $0x10] sm:$0xff]
        %v380 = vld [vmem:[%s2 + $0x18] sm:$0xff]
        %v381 = vld [vmem:[%s2 + $0x20] sm:$0xff]
        %v382 = vld [vmem:[%s2 + $0x28] sm:$0xff]
        %v383 = vld [vmem:[%s2 + $0x30] sm:$0xff]
        %v384 = vld [vmem:[%s2 + $0x38] sm:$0xff]
        %v385 = vld [vmem:[%s2 + $0x40] sm:$0xff]
        %v386 = vld [vmem:[%s2 + $0x48] sm:$0xff]
        %v387 = vld [vmem:[%s2 + $0x50] sm:$0xff]
        %v388 = vld [vmem:[%s2 + $0x58] sm:$0xff]
        %v389 = vld [vmem:[%s2 + $0x60] sm:$0xff]
        %v390 = vld [vmem:[%s2 + $0x68] sm:$0xff]
        %v391 = vld [vmem:[%s2 + $0x70] sm:$0xff]
        %v392 = vld [vmem:[%s2 + $0x78] sm:$0xff]
        %v393 = vld [vmem:[%s2 + $0x80] sm:$0xff]
        %v394 = vld [vmem:[%s2 + $0x88] sm:$0xff]
        %v395 = vld [vmem:[%s2 + $0x90] sm:$0xff]
        %v396 = vld [vmem:[%s2 + $0x98] sm:$0xff]
        %v397 = vld [vmem:[%s2 + $0xa0] sm:$0xff]
        %v398 = vld [vmem:[%s2 + $0xa8] sm:$0xff]
        %v399 = vld [vmem:[%s2 + $0xb0] sm:$0xff]
        %v400 = vld [vmem:[%s2 + $0xb8] sm:$0xff]
        %v401 = vld [vmem:[%s2 + $0xc0] sm:$0xff]
        %v402 = vld [vmem:[%s2 + $0xc8] sm:$0xff]
        %v403 = vld [vmem:[%s2 + $0xd0] sm:$0xff]
        %v404 = vld [vmem:[%s2 + $0xd8] sm:$0xff]
        %v405 = vld [vmem:[%s2 + $0xe0] sm:$0xff]
        %v406 = vld [vmem:[%s2 + $0xe8] sm:$0xff]
        %v407 = vld [vmem:[%s2 + $0xf0] sm:$0xff]
        %v408 = vld [vmem:[%s2 + $0xf8] sm:$0xff]
        %v409 = vld [vmem:[%s2 + $0x100] sm:$0xff]
        %v410 = vld [vmem:[%s2 + $0x108] sm:$0xff]
        %v411 = vld [vmem:[%s2 + $0x110] sm:$0xff]
        %v412 = vld [vmem:[%s2 + $0x118] sm:$0xff]
        %v413 = vld [vmem:[%s2 + $0x120] sm:$0xff]
        %v414 = vld [vmem:[%s2 + $0x128] sm:$0xff]
        %v415 = vld [vmem:[%s2 + $0x130] sm:$0xff]
        %v416 = vld [vmem:[%s2 + $0x138] sm:$0xff]
        %v417 = vld [vmem:[%s2 + $0x140] sm:$0xff]
        %v418 = vld [vmem:[%s2 + $0x148] sm:$0xff]
        %v419 = vld [vmem:[%s2 + $0x150] sm:$0xff]
        %v420 = vld [vmem:[%s2 + $0x158] sm:$0xff]
        %v421 = vld [vmem:[%s2 + $0x160] sm:$0xff]
        %v422 = vld [vmem:[%s2 + $0x168] sm:$0xff]
        %v423 = vld [vmem:[%s2 + $0x170] sm:$0xff]
        %v424 = vld [vmem:[%s2 + $0x178] sm:$0xff]
        %v425 = vld [vmem:[%s3] sm:$0x7]
        %v427 = vlaneseq
        %v428 = vshrl.u32 %v427, 7
        %v429 = vsub.s32 0, %v428
        %v430 = vrot.slane %v425, %v429
        %v431 = vlaneseq
        %v432 = vshrl.u32 %v431, 7
        %v433 = vsub.s32 1, %v432
        %v434 = vrot.slane %v425, %v433
        %v435 = vlaneseq
        %v436 = vshrl.u32 %v435, 7
        %v437 = vsub.s32 2, %v436
        %v438 = vrot.slane %v425, %v437
        %442 = vmatprep.subr.mxu0 %v423
        %443 = vmatpush1.msra.mxu0 %v422
        %444 = vmatprep.subr.mxu0 %v420
        %445 = vmatpush1.msra.mxu0 %v419
        %446 = vmatprep.subr.mxu0 %v417
        %447 = vmatpush1.msra.mxu0 %v416
        %448 = vmatprep.subr.mxu0 %v414
        %449 = vmatpush1.msra.mxu0 %v413
        %450 = vmatprep.subr.mxu0 %v411
        %451 = vmatpush1.msra.mxu0 %v410
        %452 = vmatprep.subr.mxu0 %v408
        %453 = vmatpush1.msra.mxu0 %v407
        %454 = vmatprep.subr.mxu0 %v405
        %455 = vmatpush1.msra.mxu0 %v404
        %456 = vmatprep.subr.mxu0 %v402
        %457 = vmatpush1.msra.mxu0 %v401
        %458 = vmatprep.subr.mxu0 %v399
        %459 = vmatpush1.msra.mxu0 %v398
        %460 = vmatprep.subr.mxu0 %v396
        %461 = vmatpush1.msra.mxu0 %v395
        %462 = vmatprep.subr.mxu0 %v393
        %463 = vmatpush1.msra.mxu0 %v392
        %464 = vmatprep.subr.mxu0 %v390
        %465 = vmatpush1.msra.mxu0 %v389
        %466 = vmatprep.subr.mxu0 %v387
        %467 = vmatpush1.msra.mxu0 %v386
        %468 = vmatprep.subr.mxu0 %v384
        %469 = vmatpush1.msra.mxu0 %v383
        %470 = vmatprep.subr.mxu0 %v381
        %471 = vmatpush1.msra.mxu0 %v380
        %472 = vmatprep.subr.mxu0 %v378
        %473 = vmatpush1.msra.mxu0 %v377
        %474 = vmatprep.subr.mxu0 0.0
        %475 = vmatpush2.msra.mxu0 0.0
        %476 = vmatprep.subr.mxu0 0.0
        %477 = vmatpush2.msra.mxu0 0.0
        %478 = vmatprep.subr.mxu0 0.0
        %479 = vmatpush2.msra.mxu0 0.0
        %480 = vmatprep.subr.mxu0 0.0
        %481 = vmatpush2.msra.mxu0 0.0
        %482 = vmatprep.subr.mxu0 0.0
        %483 = vmatpush2.msra.mxu0 0.0
        %484 = vmatprep.subr.mxu0 0.0
        %485 = vmatpush2.msra.mxu0 0.0
        %486 = vmatprep.subr.mxu0 0.0
        %487 = vmatpush2.msra.mxu0 0.0
        %488 = vmatprep.subr.mxu0 0.0
        %489 = vmatpush2.msra.mxu0 0.0
        %490 = vmatprep.subr.mxu0 0.0
        %491 = vmatpush2.msra.mxu0 0.0
        %492 = vmatprep.subr.mxu0 0.0
        %493 = vmatpush2.msra.mxu0 0.0
        %494 = vmatprep.subr.mxu0 0.0
        %495 = vmatpush2.msra.mxu0 0.0
        %496 = vmatprep.subr.mxu0 0.0
        %497 = vmatpush2.msra.mxu0 0.0
        %498 = vmatprep.subr.mxu0 0.0
        %499 = vmatpush2.msra.mxu0 0.0
        %500 = vmatprep.subr.mxu0 0.0
        %501 = vmatpush2.msra.mxu0 0.0
        %502 = vmatprep.subr.mxu0 0.0
        %503 = vmatpush2.msra.mxu0 0.0
        %504 = vmatprep.subr.mxu0 0.0
        %505 = vmatpush2.msra.mxu0 0.0
        %506 = vmatprep.mubr.f32.mxu0 0.0
        %507 = vmatmul.mubr.f32.gmra.mxu0 %v373
        %v508 = vpop.f32.mrf.mxu0
        %v509 = vadd.f32 %v430, %v508
        %v510 = vpop.f32.mrf.mxu0
        %v511 = vadd.f32 %v434, %v510
        %512 = vmatprep.mubr.f32.mxu0 0.0
        %513 = vmatmul.mubr.f32.gmra.mxu0 %v374
        %v514 = vpop.f32.mrf.mxu0
        %v515 = vadd.f32 %v430, %v514
        %v516 = vpop.f32.mrf.mxu0
        %v517 = vadd.f32 %v434, %v516
        %518 = vmatprep.mubr.f32.mxu0 0.0
        %519 = vmatmul.mubr.f32.gmra.mxu0 %v375
        %v520 = vpop.f32.mrf.mxu0
        %v521 = vadd.f32 %v430, %v520
        %v522 = vpop.f32.mrf.mxu0
        %v523 = vadd.f32 %v434, %v522
        %524 = vmatprep.mubr.f32.mxu0 0.0
        %525 = vmatmul.mubr.f32.gmra.mxu0 %v376
        %v526 = vpop.f32.mrf.mxu0
        %v527 = vadd.f32 %v430, %v526
        %v528 = vpop.f32.mrf.mxu0
        %v529 = vadd.f32 %v434, %v528
        %530 = vdwg.mxu0
        %531 = vmatprep.subr.mxu0 0.0
        %532 = vmatpush1.msra.mxu0 %v424
        %533 = vmatprep.subr.mxu0 0.0
        %534 = vmatpush1.msra.mxu0 %v421
        %535 = vmatprep.subr.mxu0 0.0
        %536 = vmatpush1.msra.mxu0 %v418
        %537 = vmatprep.subr.mxu0 0.0
        %538 = vmatpush1.msra.mxu0 %v415
        %539 = vmatprep.subr.mxu0 0.0
        %540 = vmatpush1.msra.mxu0 %v412
        %541 = vmatprep.subr.mxu0 0.0
        %542 = vmatpush1.msra.mxu0 %v409
        %543 = vmatprep.subr.mxu0 0.0
        %544 = vmatpush1.msra.mxu0 %v406
        %545 = vmatprep.subr.mxu0 0.0
        %546 = vmatpush1.msra.mxu0 %v403
        %547 = vmatprep.subr.mxu0 0.0
        %548 = vmatpush1.msra.mxu0 %v400
        %549 = vmatprep.subr.mxu0 0.0
        %550 = vmatpush1.msra.mxu0 %v397
        %551 = vmatprep.subr.mxu0 0.0
        %552 = vmatpush1.msra.mxu0 %v394
        %553 = vmatprep.subr.mxu0 0.0
        %554 = vmatpush1.msra.mxu0 %v391
        %555 = vmatprep.subr.mxu0 0.0
        %556 = vmatpush1.msra.mxu0 %v388
        %557 = vmatprep.subr.mxu0 0.0
        %558 = vmatpush1.msra.mxu0 %v385
        %559 = vmatprep.subr.mxu0 0.0
        %560 = vmatpush1.msra.mxu0 %v382
        %561 = vmatprep.subr.mxu0 0.0
        %562 = vmatpush1.msra.mxu0 %v379
        %563 = vmatprep.subr.mxu0 0.0
        %564 = vmatpush2.msra.mxu0 0.0
        %565 = vmatprep.subr.mxu0 0.0
        %566 = vmatpush2.msra.mxu0 0.0
        %567 = vmatprep.subr.mxu0 0.0
        %568 = vmatpush2.msra.mxu0 0.0
        %569 = vmatprep.subr.mxu0 0.0
        %570 = vmatpush2.msra.mxu0 0.0
        %571 = vmatprep.subr.mxu0 0.0
        %572 = vmatpush2.msra.mxu0 0.0
        %573 = vmatprep.subr.mxu0 0.0
        %574 = vmatpush2.msra.mxu0 0.0
        %575 = vmatprep.subr.mxu0 0.0
        %576 = vmatpush2.msra.mxu0 0.0
        %577 = vmatprep.subr.mxu0 0.0
        %578 = vmatpush2.msra.mxu0 0.0
        %579 = vmatprep.subr.mxu0 0.0
        %580 = vmatpush2.msra.mxu0 0.0
        %581 = vmatprep.subr.mxu0 0.0
        %582 = vmatpush2.msra.mxu0 0.0
        %583 = vmatprep.subr.mxu0 0.0
        %584 = vmatpush2.msra.mxu0 0.0
        %585 = vmatprep.subr.mxu0 0.0
        %586 = vmatpush2.msra.mxu0 0.0
        %587 = vmatprep.subr.mxu0 0.0
        %588 = vmatpush2.msra.mxu0 0.0
        %589 = vmatprep.subr.mxu0 0.0
        %590 = vmatpush2.msra.mxu0 0.0
        %591 = vmatprep.subr.mxu0 0.0
        %592 = vmatpush2.msra.mxu0 0.0
        %593 = vmatprep.subr.mxu0 0.0
        %594 = vmatpush2.msra.mxu0 0.0
        %595 = vmatprep.mubr.f32.mxu0 0.0
        %596 = vmatmul.mubr.f32.gmra.mxu0 %v373
        %v597 = vpop.f32.mrf.mxu0
        %v598 = vadd.f32 %v438, %v597
        %v599 = vpop.f32.mrf.mxu0
        %600 = vmatprep.mubr.f32.mxu0 0.0
        %601 = vmatmul.mubr.f32.gmra.mxu0 %v374
        %v602 = vpop.f32.mrf.mxu0
        %v603 = vadd.f32 %v438, %v602
        %v604 = vpop.f32.mrf.mxu0
        %605 = vmatprep.mubr.f32.mxu0 0.0
        %606 = vmatmul.mubr.f32.gmra.mxu0 %v375
        %v607 = vpop.f32.mrf.mxu0
        %v608 = vadd.f32 %v438, %v607
        %v609 = vpop.f32.mrf.mxu0
        %610 = vmatprep.mubr.f32.mxu0 0.0
        %611 = vmatmul.mubr.f32.gmra.mxu0 %v376
        %v612 = vpop.f32.mrf.mxu0
        %v613 = vadd.f32 %v438, %v612
        %v614 = vpop.f32.mrf.mxu0
        %615 = vdwg.mxu0
        %v616 = vld [vmem:[%s347] sm:$0xff]
        %v617 = vld [vmem:[%s347 + $0x8] sm:$0xff]
        %v618 = vld [vmem:[%s347 + $0x10] sm:$0xff]
        %v619 = vld [vmem:[%s347 + $0x18] sm:$0x1]
        %620 = vmatprep.subr.mxu0 0.0
        %621 = vmatpush1.xpose.msra.mxu0 0.0
        %622 = vmatprep.subr.mxu0 0.0
        %623 = vmatpush1.xpose.msra.mxu0 0.0
        %624 = vmatprep.subr.mxu0 0.0
        %625 = vmatpush1.xpose.msra.mxu0 0.0
        %626 = vmatprep.subr.mxu0 0.0
        %627 = vmatpush1.xpose.msra.mxu0 0.0
        %628 = vmatprep.subr.mxu0 0.0
        %629 = vmatpush1.xpose.msra.mxu0 0.0
        %630 = vmatprep.subr.mxu0 0.0
        %631 = vmatpush1.xpose.msra.mxu0 0.0
        %632 = vmatprep.subr.mxu0 0.0
        %633 = vmatpush1.xpose.msra.mxu0 0.0
        %634 = vmatprep.subr.mxu0 0.0
        %635 = vmatpush1.xpose.msra.mxu0 0.0
        %636 = vmatprep.subr.mxu0 0.0
        %637 = vmatpush1.xpose.msra.mxu0 0.0
        %638 = vmatprep.subr.mxu0 0.0
        %639 = vmatpush1.xpose.msra.mxu0 0.0
        %640 = vmatprep.subr.mxu0 0.0
        %641 = vmatpush1.xpose.msra.mxu0 0.0
        %642 = vmatprep.subr.mxu0 0.0
        %643 = vmatpush1.xpose.msra.mxu0 0.0
        %644 = vmatprep.subr.mxu0 0.0
        %645 = vmatpush1.xpose.msra.mxu0 %v529
        %646 = vmatprep.subr.mxu0 0.0
        %647 = vmatpush1.xpose.msra.mxu0 %v523
        %648 = vmatprep.subr.mxu0 0.0
        %649 = vmatpush1.xpose.msra.mxu0 %v517
        %650 = vmatprep.subr.mxu0 0.0
        %651 = vmatpush1.xpose.msra.mxu0 %v511
        %652 = vmatprep.subr.mxu0 0.0
        %653 = vmatpush2.xpose.msra.mxu0 0.0
        %654 = vmatprep.subr.mxu0 0.0
        %655 = vmatpush2.xpose.msra.mxu0 0.0
        %656 = vmatprep.subr.mxu0 0.0
        %657 = vmatpush2.xpose.msra.mxu0 0.0
        %658 = vmatprep.subr.mxu0 0.0
        %659 = vmatpush2.xpose.msra.mxu0 0.0
        %660 = vmatprep.subr.mxu0 0.0
        %661 = vmatpush2.xpose.msra.mxu0 0.0
        %662 = vmatprep.subr.mxu0 0.0
        %663 = vmatpush2.xpose.msra.mxu0 0.0
        %664 = vmatprep.subr.mxu0 0.0
        %665 = vmatpush2.xpose.msra.mxu0 0.0
        %666 = vmatprep.subr.mxu0 0.0
        %667 = vmatpush2.xpose.msra.mxu0 0.0
        %668 = vmatprep.subr.mxu0 0.0
        %669 = vmatpush2.xpose.msra.mxu0 0.0
        %670 = vmatprep.subr.mxu0 0.0
        %671 = vmatpush2.xpose.msra.mxu0 0.0
        %672 = vmatprep.subr.mxu0 0.0
        %673 = vmatpush2.xpose.msra.mxu0 0.0
        %674 = vmatprep.subr.mxu0 0.0
        %675 = vmatpush2.xpose.msra.mxu0 0.0
        %676 = vmatprep.subr.mxu0 0.0
        %677 = vmatpush2.xpose.msra.mxu0 0.0
        %678 = vmatprep.subr.mxu0 0.0
        %679 = vmatpush2.xpose.msra.mxu0 0.0
        %680 = vmatprep.subr.mxu0 0.0
        %681 = vmatpush2.xpose.msra.mxu0 0.0
        %682 = vmatprep.subr.mxu0 0.0
        %683 = vmatpush2.xpose.msra.mxu0 0.0
        %684 = vmatprep.mubr.f32.mxu0 0.0
        %685 = vmatmul.mubr.f32.gmra.mxu0 %v509
        %v686 = vpop.f32.mrf.mxu0
        %v687 = vadd.f32 %v616, %v686
        %v688 = vpop.f32.mrf.mxu0
        %689 = vmatprep.mubr.f32.mxu0 0.0
        %690 = vmatmul.mubr.f32.gmra.mxu0 %v515
        %v691 = vpop.f32.mrf.mxu0
        %v692 = vadd.f32 %v617, %v691
        %v693 = vpop.f32.mrf.mxu0
        %694 = vmatprep.mubr.f32.mxu0 0.0
        %695 = vmatmul.mubr.f32.gmra.mxu0 %v521
        %v696 = vpop.f32.mrf.mxu0
        %v697 = vadd.f32 %v618, %v696
        %v698 = vpop.f32.mrf.mxu0
        %699 = vmatprep.mubr.f32.mxu0 0.0
        %700 = vmatmul.mubr.f32.gmra.mxu0 %v527
        %v701 = vpop.f32.mrf.mxu0
        %v702 = vadd.f32 %v619, %v701
        %v703 = vpop.f32.mrf.mxu0
        %704 = vdwg.mxu0
        %vm705 = vcmask 203776
        %v706 = vsel %vm705, %v687, -inf
        %707 = vmax.xlane.f32.xlu0 %v706
        %v708 = vpop.xlane.xlu0 %707
        %v709 = vsel %vm705, %v692, -inf
        %710 = vmax.xlane.f32.xlu0 %v709
        %v711 = vpop.xlane.xlu0 %710
        %v712 = vsel %vm705, %v697, -inf
        %713 = vmax.xlane.f32.xlu0 %v712
        %v714 = vpop.xlane.xlu0 %713
        %vm715 = vcmask 196608
        %v716 = vsel %vm715, %v702, -inf
        %717 = vmax.xlane.f32.xlu0 %v716
        %v718 = vpop.xlane.xlu0 %717
        %v719 = vsub.f32 %v687, %v708
        %v720 = vsub.f32 %v692, %v711
        %v721 = vsub.f32 %v697, %v714
        %v722 = vsub.f32 %v702, %v718
        %v723 = vmul.f32 %v719, 1.442695
        %v724 = vpow.pop %v723
        %v725 = vmul.f32 %v720, 1.442695
        %v726 = vpow.pop %v725
        %v727 = vmul.f32 %v721, 1.442695
        %v728 = vpow.pop %v727
        %v729 = vmul.f32 %v722, 1.442695
        %v730 = vpow.pop %v729
        %v731 = vsel %vm705, %v724, 0.0
        %732 = vadd.xlane.f32.xlu0 %v731
        %v733 = vpop.xlane.xlu0 %732
        %v734 = vsel %vm705, %v726, 0.0
        %735 = vadd.xlane.f32.xlu0 %v734
        %v736 = vpop.xlane.xlu0 %735
        %v737 = vsel %vm705, %v728, 0.0
        %738 = vadd.xlane.f32.xlu0 %v737
        %v739 = vpop.xlane.xlu0 %738
        %v740 = vsel %vm715, %v730, 0.0
        %741 = vadd.xlane.f32.xlu0 %v740
        %v742 = vpop.xlane.xlu0 %741
        %v743 = vrcp.pop %v733
        %v744 = vmul.f32 %v724, %v743
        %v745 = vrcp.pop %v736
        %v746 = vmul.f32 %v726, %v745
        %v747 = vrcp.pop %v739
        %v748 = vmul.f32 %v728, %v747
        %v749 = vrcp.pop %v742
        %v750 = vmul.f32 %v730, %v749
        %v752 = vsel %vm705, %v744, 0
        %v755 = vsel %vm705, %v746, 0
        %v758 = vsel %vm705, %v748, 0
        %v761 = vsel %vm705, %v750, 0
        %vm763 = vcmask 1040384
        %v765 = vsel %vm763, %v613, 0
        %767 = vmatprep.subr.mxu0 0.0
        %768 = vmatpush1.msra.mxu0 0.0
        %769 = vmatprep.subr.mxu0 0.0
        %770 = vmatpush1.msra.mxu0 0.0
        %771 = vmatprep.subr.mxu0 0.0
        %772 = vmatpush1.msra.mxu0 0.0
        %773 = vmatprep.subr.mxu0 0.0
        %774 = vmatpush1.msra.mxu0 0.0
        %775 = vmatprep.subr.mxu0 0.0
        %776 = vmatpush1.msra.mxu0 0.0
        %777 = vmatprep.subr.mxu0 0.0
        %778 = vmatpush1.msra.mxu0 0.0
        %779 = vmatprep.subr.mxu0 0.0
        %780 = vmatpush1.msra.mxu0 0.0
        %781 = vmatprep.subr.mxu0 0.0
        %782 = vmatpush1.msra.mxu0 0.0
        %783 = vmatprep.subr.mxu0 0.0
        %784 = vmatpush1.msra.mxu0 0.0
        %785 = vmatprep.subr.mxu0 0.0
        %786 = vmatpush1.msra.mxu0 0.0
        %787 = vmatprep.subr.mxu0 0.0
        %788 = vmatpush1.msra.mxu0 0.0
        %789 = vmatprep.subr.mxu0 0.0
        %790 = vmatpush1.msra.mxu0 0.0
        %791 = vmatprep.subr.mxu0 0.0
        %792 = vmatpush1.msra.mxu0 %v765
        %793 = vmatprep.subr.mxu0 0.0
        %794 = vmatpush1.msra.mxu0 %v608
        %795 = vmatprep.subr.mxu0 0.0
        %796 = vmatpush1.msra.mxu0 %v603
        %797 = vmatprep.subr.mxu0 0.0
        %798 = vmatpush1.msra.mxu0 %v598
        %799 = vmatprep.subr.mxu0 0.0
        %800 = vmatpush2.msra.mxu0 0.0
        %801 = vmatprep.subr.mxu0 0.0
        %802 = vmatpush2.msra.mxu0 0.0
        %803 = vmatprep.subr.mxu0 0.0
        %804 = vmatpush2.msra.mxu0 0.0
        %805 = vmatprep.subr.mxu0 0.0
        %806 = vmatpush2.msra.mxu0 0.0
        %807 = vmatprep.subr.mxu0 0.0
        %808 = vmatpush2.msra.mxu0 0.0
        %809 = vmatprep.subr.mxu0 0.0
        %810 = vmatpush2.msra.mxu0 0.0
        %811 = vmatprep.subr.mxu0 0.0
        %812 = vmatpush2.msra.mxu0 0.0
        %813 = vmatprep.subr.mxu0 0.0
        %814 = vmatpush2.msra.mxu0 0.0
        %815 = vmatprep.subr.mxu0 0.0
        %816 = vmatpush2.msra.mxu0 0.0
        %817 = vmatprep.subr.mxu0 0.0
        %818 = vmatpush2.msra.mxu0 0.0
        %819 = vmatprep.subr.mxu0 0.0
        %820 = vmatpush2.msra.mxu0 0.0
        %821 = vmatprep.subr.mxu0 0.0
        %822 = vmatpush2.msra.mxu0 0.0
        %823 = vmatprep.subr.mxu0 0.0
        %824 = vmatpush2.msra.mxu0 0.0
        %825 = vmatprep.subr.mxu0 0.0
        %826 = vmatpush2.msra.mxu0 0.0
        %827 = vmatprep.subr.mxu0 0.0
        %828 = vmatpush2.msra.mxu0 0.0
        %829 = vmatprep.subr.mxu0 0.0
        %830 = vmatpush2.msra.mxu0 0.0
        %831 = vmatprep.mubr.f32.mxu0 0.0
        %832 = vmatmul.mubr.f32.gmra.mxu0 %v752
        %v833 = vpop.f32.mrf.mxu0
        %v834 = vadd.f32 0.0, %v833
        %v835 = vpop.f32.mrf.mxu0
        %836 = vmatprep.mubr.f32.mxu0 0.0
        %837 = vmatmul.mubr.f32.gmra.mxu0 %v755
        %v838 = vpop.f32.mrf.mxu0
        %v839 = vadd.f32 0.0, %v838
        %v840 = vpop.f32.mrf.mxu0
        %841 = vmatprep.mubr.f32.mxu0 0.0
        %842 = vmatmul.mubr.f32.gmra.mxu0 %v758
        %v843 = vpop.f32.mrf.mxu0
        %v844 = vadd.f32 0.0, %v843
        %v845 = vpop.f32.mrf.mxu0
        %846 = vmatprep.mubr.f32.mxu0 0.0
        %847 = vmatmul.mubr.f32.gmra.mxu0 %v761
        %v848 = vpop.f32.mrf.mxu0
        %v849 = vadd.f32 0.0, %v848
        %v850 = vpop.f32.mrf.mxu0
        %851 = vdwg.mxu0
        %v852 = vpack.c.bf16 %v839, %v834
        %v853 = vpack.c.bf16 %v849, %v844
        %v856 = vunpack.c.l.b16 %v852
        %v857 = vunpack.c.h.b16 %v852
        %v858 = vunpack.c.l.b16 %v853
        %v859 = vunpack.c.h.b16 %v853
        %v860 = vpack.c.b16 %v856, %v856
        %v861 = vpack.c.b16 %v857, %v857
        %v862 = vpack.c.b16 %v858, %v858
        %v863 = vpack.c.b16 %v859, %v859
        %868 = vst [vmem:[#allocation2] sm:$0xf] %v860
        %869 = vst [vmem:[#allocation2 + $0x4] sm:$0xf] %v861
        %870 = vst [vmem:[#allocation2 + $0x8] sm:$0xf] %v862
        %vm871 = vcmask 1040384
        %vm872 = vsmask.f32 256
        %vm873 = vmand %vm871, %vm872
        %v874 = vld [vmem:[#allocation2 + $0xc] sm:$0x1]
        %v875 = vsel %vm873, %v863, %v874
        %876 = vst [vmem:[#allocation2 + $0xc] sm:$0x1] %v875
      $region52: #{stan_forward.1} parent=47 // pred_fallthru
        _
      %v877 = vld [vmem:[#allocation2] sm:$0xf]
      %v878 = vld [vmem:[#allocation2 + $0x4] sm:$0xf]
      %v879 = vld [vmem:[#allocation2 + $0x8] sm:$0xf]
      %v880 = vld [vmem:[#allocation2 + $0xc] sm:$0x1]
      %v881 = vld [vmem:[%s352] sm:$0xf]
      %v882 = vld [vmem:[%s352 + $0x4] sm:$0xf]
      %v883 = vld [vmem:[%s352 + $0x8] sm:$0xf]
      %v884 = vld [vmem:[%s352 + $0xc] sm:$0xf]
      %v885 = vld [vmem:[%s352 + $0x10] sm:$0xf]
      %v886 = vld [vmem:[%s352 + $0x14] sm:$0xf]
      %v887 = vld [vmem:[%s352 + $0x18] sm:$0xf]
      %v888 = vld [vmem:[%s352 + $0x1c] sm:$0xf]
      %v889 = vld [vmem:[%s352 + $0x20] sm:$0xf]
      %v890 = vld [vmem:[%s352 + $0x24] sm:$0xf]
      %v891 = vld [vmem:[%s352 + $0x28] sm:$0xf]
      %v892 = vld [vmem:[%s352 + $0x2c] sm:$0xf]
      %v893 = vld [vmem:[%s352 + $0x30] sm:$0xf]
      %v894 = vld [vmem:[%s352 + $0x34] sm:$0xf]
      %v895 = vld [vmem:[%s352 + $0x38] sm:$0xf]
      %v896 = vld [vmem:[%s352 + $0x3c] sm:$0xf]
      %v901 = vunpack.c.l.b16 %v877
      %v902 = vunpack.c.l.b16 %v878
      %v903 = vunpack.c.l.b16 %v879
      %v904 = vunpack.c.l.b16 %v880
      %v905 = vpack.c.b16 %v902, %v901
      %v906 = vpack.c.b16 %v904, %v903
      %v925 = vunpack.c.l.b16 %v881
      %v926 = vunpack.c.l.b16 %v882
      %v927 = vunpack.c.l.b16 %v883
      %v928 = vunpack.c.l.b16 %v884
      %v929 = vunpack.c.l.b16 %v885
      %v930 = vunpack.c.l.b16 %v886
      %v931 = vunpack.c.l.b16 %v887
      %v932 = vunpack.c.l.b16 %v888
      %v933 = vunpack.c.l.b16 %v889
      %v934 = vunpack.c.l.b16 %v890
      %v935 = vunpack.c.l.b16 %v891
      %v936 = vunpack.c.l.b16 %v892
      %v937 = vunpack.c.l.b16 %v893
      %v938 = vunpack.c.l.b16 %v894
      %v939 = vunpack.c.l.b16 %v895
      %v940 = vunpack.c.l.b16 %v896
      %v941 = vpack.c.b16 %v926, %v925
      %v942 = vpack.c.b16 %v928, %v927
      %v943 = vpack.c.b16 %v930, %v929
      %v944 = vpack.c.b16 %v932, %v931
      %v945 = vpack.c.b16 %v934, %v933
      %v946 = vpack.c.b16 %v936, %v935
      %v947 = vpack.c.b16 %v938, %v937
      %v948 = vpack.c.b16 %v940, %v939
      %957 = vmatprep.subr.bf16.mxu0 0
      %958 = vmatpush1.bf16.xpose.msra.mxu0 %v948
      %959 = vmatprep.subr.bf16.mxu0 0
      %960 = vmatpush1.bf16.xpose.msra.mxu0 %v947
      %961 = vmatprep.subr.bf16.mxu0 0
      %962 = vmatpush1.bf16.xpose.msra.mxu0 %v946
      %963 = vmatprep.subr.bf16.mxu0 0
      %964 = vmatpush1.bf16.xpose.msra.mxu0 %v945
      %965 = vmatprep.subr.bf16.mxu0 0
      %966 = vmatpush1.bf16.xpose.msra.mxu0 %v944
      %967 = vmatprep.subr.bf16.mxu0 0
      %968 = vmatpush1.bf16.xpose.msra.mxu0 %v943
      %969 = vmatprep.subr.bf16.mxu0 0
      %970 = vmatpush1.bf16.xpose.msra.mxu0 %v942
      %971 = vmatprep.subr.bf16.mxu0 0
      %972 = vmatpush1.bf16.xpose.msra.mxu0 %v941
      %973 = vmatprep.subr.bf16.mxu0 0
      %974 = vmatpush2.bf16.xpose.msra.mxu0 0
      %975 = vmatprep.subr.bf16.mxu0 0
      %976 = vmatpush2.bf16.xpose.msra.mxu0 0
      %977 = vmatprep.subr.bf16.mxu0 0
      %978 = vmatpush2.bf16.xpose.msra.mxu0 0
      %979 = vmatprep.subr.bf16.mxu0 0
      %980 = vmatpush2.bf16.xpose.msra.mxu0 0
      %981 = vmatprep.subr.bf16.mxu0 0
      %982 = vmatpush2.bf16.xpose.msra.mxu0 0
      %983 = vmatprep.subr.bf16.mxu0 0
      %984 = vmatpush2.bf16.xpose.msra.mxu0 0
      %985 = vmatprep.subr.bf16.mxu0 0
      %986 = vmatpush2.bf16.xpose.msra.mxu0 0
      %987 = vmatprep.subr.bf16.mxu0 0
      %988 = vmatpush2.bf16.xpose.msra.mxu0 0
      %989 = vmatprep.mubr.bf16.mxu0 0
      %990 = vmatmul.mubr.bf16.gmra.mxu0 %v905
      %v991 = vpop.f32.mrf.mxu0
      %v992 = vadd.f32 0.0, %v991
      %v993 = vpop.f32.mrf.mxu0
      %v994 = vpop.f32.mrf.mxu0
      %v995 = vadd.f32 0.0, %v994
      %v996 = vpop.f32.mrf.mxu0
      %997 = vmatprep.mubr.bf16.mxu0 0
      %998 = vmatmul.mubr.bf16.gmra.mxu0 %v906
      %v999 = vpop.f32.mrf.mxu0
      %v1000 = vadd.f32 0.0, %v999
      %v1001 = vpop.f32.mrf.mxu0
      %v1002 = vpop.f32.mrf.mxu0
      %v1003 = vadd.f32 0.0, %v1002
      %v1004 = vpop.f32.mrf.mxu0
      %1005 = vdwg.mxu0
      %v1006 = vld [vmem:[%s361] sm:$0xf]
      %v1007 = vld [vmem:[%s361 + $0x4] sm:$0xf]
      %v1008 = vld [vmem:[%s361 + $0x8] sm:$0xf]
      %v1009 = vld [vmem:[%s361 + $0xc] sm:$0x1]
      %v1010 = vunpack.c.l.bf16 %v1006
      %v1011 = vunpack.c.l.bf16 %v1007
      %v1012 = vunpack.c.l.bf16 %v1008
      %v1013 = vunpack.c.l.bf16 %v1009
      %v1014 = vmul.f32 %v992, %v1010
      %v1015 = vmul.f32 %v995, %v1011
      %v1016 = vmul.f32 %v1000, %v1012
      %v1017 = vmul.f32 %v1003, %v1013
      %v1018 = vld [vmem:[%s6] sm:$0x1]
      %vm1019 = vcmask 203776
      %v1021 = vsel %vm1019, %v1018, 0
      %vm1023 = vcmask 1040384
      %v1025 = vsel %vm1023, %v1017, 0
      %1027 = vmatprep.subr.mxu0 0.0
      %1028 = vmatpush1.msra.mxu0 0.0
      %1029 = vmatprep.subr.mxu0 0.0
      %1030 = vmatpush1.msra.mxu0 0.0
      %1031 = vmatprep.subr.mxu0 0.0
      %1032 = vmatpush1.msra.mxu0 0.0
      %1033 = vmatprep.subr.mxu0 0.0
      %1034 = vmatpush1.msra.mxu0 0.0
      %1035 = vmatprep.subr.mxu0 0.0
      %1036 = vmatpush1.msra.mxu0 0.0
      %1037 = vmatprep.subr.mxu0 0.0
      %1038 = vmatpush1.msra.mxu0 0.0
      %1039 = vmatprep.subr.mxu0 0.0
      %1040 = vmatpush1.msra.mxu0 0.0
      %1041 = vmatprep.subr.mxu0 0.0
      %1042 = vmatpush1.msra.mxu0 0.0
      %1043 = vmatprep.subr.mxu0 0.0
      %1044 = vmatpush1.msra.mxu0 0.0
      %1045 = vmatprep.subr.mxu0 0.0
      %1046 = vmatpush1.msra.mxu0 0.0
      %1047 = vmatprep.subr.mxu0 0.0
      %1048 = vmatpush1.msra.mxu0 0.0
      %1049 = vmatprep.subr.mxu0 0.0
      %1050 = vmatpush1.msra.mxu0 0.0
      %1051 = vmatprep.subr.mxu0 0.0
      %1052 = vmatpush1.msra.mxu0 %v1025
      %1053 = vmatprep.subr.mxu0 0.0
      %1054 = vmatpush1.msra.mxu0 %v1016
      %1055 = vmatprep.subr.mxu0 0.0
      %1056 = vmatpush1.msra.mxu0 %v1015
      %1057 = vmatprep.subr.mxu0 0.0
      %1058 = vmatpush1.msra.mxu0 %v1014
      %1059 = vmatprep.subr.mxu0 0.0
      %1060 = vmatpush2.msra.mxu0 0.0
      %1061 = vmatprep.subr.mxu0 0.0
      %1062 = vmatpush2.msra.mxu0 0.0
      %1063 = vmatprep.subr.mxu0 0.0
      %1064 = vmatpush2.msra.mxu0 0.0
      %1065 = vmatprep.subr.mxu0 0.0
      %1066 = vmatpush2.msra.mxu0 0.0
      %1067 = vmatprep.subr.mxu0 0.0
      %1068 = vmatpush2.msra.mxu0 0.0
      %1069 = vmatprep.subr.mxu0 0.0
      %1070 = vmatpush2.msra.mxu0 0.0
      %1071 = vmatprep.subr.mxu0 0.0
      %1072 = vmatpush2.msra.mxu0 0.0
      %1073 = vmatprep.subr.mxu0 0.0
      %1074 = vmatpush2.msra.mxu0 0.0
      %1075 = vmatprep.subr.mxu0 0.0
      %1076 = vmatpush2.msra.mxu0 0.0
      %1077 = vmatprep.subr.mxu0 0.0
      %1078 = vmatpush2.msra.mxu0 0.0
      %1079 = vmatprep.subr.mxu0 0.0
      %1080 = vmatpush2.msra.mxu0 0.0
      %1081 = vmatprep.subr.mxu0 0.0
      %1082 = vmatpush2.msra.mxu0 0.0
      %1083 = vmatprep.subr.mxu0 0.0
      %1084 = vmatpush2.msra.mxu0 0.0
      %1085 = vmatprep.subr.mxu0 0.0
      %1086 = vmatpush2.msra.mxu0 0.0
      %1087 = vmatprep.subr.mxu0 0.0
      %1088 = vmatpush2.msra.mxu0 0.0
      %1089 = vmatprep.subr.mxu0 0.0
      %1090 = vmatpush2.msra.mxu0 0.0
      %1091 = vmatprep.mubr.f32.mxu0 0.0
      %1092 = vmatmul.mubr.f32.gmra.mxu0 %v1021
      %v1093 = vpop.f32.mrf.mxu0
      %v1094 = vadd.f32 0.0, %v1093
      %v1095 = vpop.f32.mrf.mxu0
      %1096 = vdwg.mxu0
      %1097 = vst [vmem:[%s367] sm:$0x1] %v1094
      %p1098 = scmp.lt.s32.totalorder %s22, 1
      %s1099 = scalar_select %p1098, %s22, 1
      %p1100 = scmp.lt.s32.totalorder %s23, 0
      %s1101 = scalar_select %p1100, %s23, 0
      %s1102 = sadd.s32 %s1101, %s1099
      %s1103 = scalar_lea.vmem %s7, %s1102
      // Predicated region
      $region53: #{stan_forward.1} parent=47 // pred_check
        %p1104 = pneg %p219
      $region54: #{stan_forward.1} parent=47 // pred_check_branch
        %1106 = sbr.rel (%p1104) target = $region56
      $region55: #{stan_forward.1} parent=47 // pred_region
        _
      $region56: #{stan_forward.1} parent=47 // pred_fallthru
        _
    $region48: #{stan_forward.1} parent=5 // pred_fallthru
      _
    %p1107 = scmp.le.s32.totalorder 2, %s13
    // Predicated region
    $region57: #{stan_forward.1} parent=5 // pred_check
      %p1108 = pneg %p1107
    $region58: #{stan_forward.1} parent=5 // pred_check_branch
      %1110 = sbr.rel (%p1108) target = $region60
    $region59: #{stan_forward.1} parent=5 // pred_region
      %s1111 = ssub.s32 %s13, 2
      // Predicated region
      $region61: #{stan_forward.1} parent=59 // pred_check
        %p1112 = pneg %p225
      $region62: #{stan_forward.1} parent=59 // pred_check_branch
        %1114 = sbr.rel (%p1112) target = $region64
      $region63: #{stan_forward.1} parent=59 // pred_region
        %p1115 = scmp.lt.s32.totalorder %s24, 1
        %s1116 = scalar_select %p1115, %s24, 1
        %p1117 = scmp.lt.s32.totalorder %s25, 0
        %s1118 = scalar_select %p1117, %s25, 0
        %s1119 = sadd.s32 %s1118, %s1116
        %s1120 = scalar_lea.vmem %s7, %s1119
      $region64: #{stan_forward.1} parent=59 // pred_fallthru
        _
    $region60: #{stan_forward.1} parent=5 // pred_fallthru
      _
  $region6: #{stan_forward.1} parent=0 // loop_footer
    %s17 = sadd.s32 1, %s13
  $region7: #{stan_forward.1} parent=0 // loop_footer_branch
    %12 = sbr.rel target = $region3
  $region8: #{stan_forward.1} parent=0 // loop_exit
    _

</llo_original>
